<compile_context>
chip_gen: v5e
topology: v5e:2x2
jax: 0.10.0
libtpu: 0.0.40
codegen_flags: <defaults>
</compile_context>

<pallas_src>
import jax
import jax.numpy as jnp
from jax.experimental import pallas as pl
from jax.experimental.pallas import tpu as pltpu


def _round_up(x, k):
    return ((x + k - 1) // k) * k


# -----------------------------------------------------------------------------
# Primary kernel: lane-dense compute orientation.
#   params_ref : (NGP, 2)  col 0 = gaussian centers, col 1 = coeff (-0.5/width^2)
#   d_ref      : (1, TM)   distances, M on the lane axis (dense, contiguous DMA)
#   o_ref      : (TM, NG)  module-faithful output tile
# -----------------------------------------------------------------------------
def _gaussian_kernel_lane_dense(params_ref, d_ref, o_ref):
    d = d_ref[...]                         # (1, TM)   lane-dense distances
    off = params_ref[:, 0:1]               # (NGP, 1)  static lane slice
    coeff = params_ref[:, 1:2]             # (NGP, 1)
    diff = d - off                         # (NGP, TM) sublane x lane broadcast
    g = jnp.exp(coeff * (diff * diff))     # EUP, ~NG/NGP useful lanes
    t = jnp.transpose(g, (1, 0))           # XLU transpose (slot otherwise idle)
    o_ref[...] = t[:, : o_ref.shape[1]].astype(o_ref.dtype)


def _forward_lane_dense(distances, off_used, coeff, n_g, tile_m, out_dtype):
    nb, na, nn = distances.shape
    m = nb * na * nn

    # Tile rows: multiple of 128 (lane-dense input block; also covers the f32/bf16
    # sublane tiles), clamped so tiny inputs don't allocate oversized blocks.
    tm = max(128, (int(tile_m) // 128) * 128)
    tm = min(tm, _round_up(m, 128))
    steps = pl.cdiv(m, tm)
    # Keep the step count even when possible so v7x's two TensorCores get balanced
    # work under dimension_semantics=("parallel",).
    if steps > 1 and steps % 2 == 1:
        tm_even = _round_up(-(-m // (steps + 1)), 128)
        if tm_even >= 128:
            tm = tm_even
            steps = pl.cdiv(m, tm)

    ngp = _round_up(n_g, 8)                # sublane-pad the gaussian axis
    params = jnp.zeros((ngp, 2), jnp.float32)
    params = params.at[:n_g, 0].set(off_used).at[:n_g, 1].set(coeff)

    d2 = distances.reshape(1, m).astype(jnp.float32)   # contiguous view, no copy

    out = pl.pallas_call(
        _gaussian_kernel_lane_dense,
        out_shape=jax.ShapeDtypeStruct((m, n_g), out_dtype),
        grid_spec=pltpu.PrefetchScalarGridSpec(
            num_scalar_prefetch=0,
            grid=(steps,),
            in_specs=[
                pl.BlockSpec((ngp, 2), lambda i: (0, 0)),   # resident params
                pl.BlockSpec((1, tm), lambda i: (0, i)),    # lane-dense distances
            ],
            out_specs=pl.BlockSpec((tm, n_g), lambda i: (i, 0)),
        ),
        compiler_params=pltpu.CompilerParams(
            dimension_semantics=("parallel",),
            # ~15 MiB live at tm=8192 (8 MiB lane-padded out double-buffer + input
            # + transpose scratch); raise v5e's 16 MiB scoped default explicitly.
            vmem_limit_bytes=32 * 1024 * 1024,
        ),
    )(params, d2)

    return out.reshape(nb, na, nn, n_g)


# -----------------------------------------------------------------------------
# Fallback kernel: identical math, row-major orientation, no in-kernel relayout.
# Only used if the Mosaic build in use cannot lower the XLU transpose above.
# Its (TM, 1) distance block pays lane padding + a 4-byte-granule input DMA, so
# the tile is kept modest here.
# -----------------------------------------------------------------------------
def _gaussian_kernel_row_major(params_ref, d_ref, o_ref):
    d = d_ref[...]                         # (TM, 1)
    off = params_ref[0:1, :]               # (1, NG)
    coeff = params_ref[1:2, :]             # (1, NG)
    diff = d - off                         # (TM, NG)
    o_ref[...] = jnp.exp(coeff * (diff * diff)).astype(o_ref.dtype)


def _forward_row_major(distances, off_used, coeff, n_g, out_dtype):
    nb, na, nn = distances.shape
    m = nb * na * nn
    tm = min(1024, _round_up(m, 16))       # 16 covers the bf16 sublane tile
    steps = pl.cdiv(m, tm)

    params = jnp.stack([off_used, coeff], axis=0)        # (2, NG)
    d2 = distances.reshape(m, 1).astype(jnp.float32)

    out = pl.pallas_call(
        _gaussian_kernel_row_major,
        out_shape=jax.ShapeDtypeStruct((m, n_g), out_dtype),
        grid_spec=pltpu.PrefetchScalarGridSpec(
            num_scalar_prefetch=0,
            grid=(steps,),
            in_specs=[
                pl.BlockSpec((2, n_g), lambda i: (0, 0)),
                pl.BlockSpec((tm, 1), lambda i: (i, 0)),
            ],
            out_specs=pl.BlockSpec((tm, n_g), lambda i: (i, 0)),
        ),
        compiler_params=pltpu.CompilerParams(
            dimension_semantics=("parallel",),
            vmem_limit_bytes=32 * 1024 * 1024,
        ),
    )(params, d2)
    return out.reshape(nb, na, nn, n_g)


# -----------------------------------------------------------------------------
# Public API
# -----------------------------------------------------------------------------
def gaussian_basis_params(start=0.0, stop=5.0, n_gaussians=50):
    """Deterministic parameter setup, mirrors GaussianBasis.__init__."""
    offsets = jnp.linspace(start, stop, n_gaussians, dtype=jnp.float32)
    widths = (offsets[1] - offsets[0]) * jnp.ones_like(offsets)
    return offsets, widths


_LANE_DENSE_SUPPORTED = True   # flipped off once if the primary path fails to lower


def gaussian_basis(distances, offsets, widths, centered=False,
                   tile_m=8192, out_dtype=jnp.float32):
    """distances (N_b, N_at, N_nbh) -> (N_b, N_at, N_nbh, N_g); torch parity.

    out_dtype: keep float32 for exact module parity; jnp.bfloat16 halves HBM write
    traffic (the dominant cost on v5e/v6e) at bf16 precision (compute stays f32).
    Note: centered=True with any offset == 0 gives -inf coeff / NaN at d == 0,
    exactly like the torch implementation.
    """
    global _LANE_DENSE_SUPPORTED
    n_g = offsets.shape[0]

    off32 = offsets.astype(jnp.float32)
    w32 = widths.astype(jnp.float32)
    if centered:
        coeff = -0.5 / (off32 * off32)
        off_used = jnp.zeros_like(off32)
    else:
        coeff = -0.5 / (w32 * w32)
        off_used = off32

    if _LANE_DENSE_SUPPORTED:
        try:
            return _forward_lane_dense(distances, off_used, coeff, n_g, tile_m, out_dtype)
        except Exception:
            # Portability fallback: triggers only if this Mosaic build rejects the
            # in-kernel XLU transpose relayout (eager calls; under an outer
            # jax.jit a lowering failure surfaces to the caller instead).
            _LANE_DENSE_SUPPORTED = False
    return _forward_row_major(distances, off_used, coeff, n_g, out_dtype)


if __name__ == "__main__":
    # Small shapes consistent with the module's (N_b, N_at, N_nbh) input.
    N_b, N_at, N_nbh = 2, 4, 8
    n_gaussians = 50

    key = jax.random.PRNGKey(0)
    distances = jax.random.uniform(
        key, (N_b, N_at, N_nbh), dtype=jnp.float32, minval=0.0, maxval=5.0)

    # --- non-centered path (module defaults) ---
    offsets, widths = gaussian_basis_params(0.0, 5.0, n_gaussians)
    out = jax.block_until_ready(gaussian_basis(distances, offsets, widths))
    ref = jnp.exp((-0.5 / widths ** 2) * (distances[..., None] - offsets) ** 2)
    assert out.shape == (N_b, N_at, N_nbh, n_gaussians)
    assert jnp.allclose(out, ref, atol=1e-6, rtol=1e-6)

    # --- centered path (strictly positive offsets avoid the -0.5/0^2 singularity) ---
    offsets_c, widths_c = gaussian_basis_params(0.5, 5.0, n_gaussians)
    out_c = jax.block_until_ready(
        gaussian_basis(distances, offsets_c, widths_c, centered=True))
    ref_c = jnp.exp((-0.5 / offsets_c ** 2) * distances[..., None] ** 2)
    assert jnp.allclose(out_c, ref_c, atol=1e-6, rtol=1e-6)

    # --- multi-step grid with non-tile-aligned M (exercises partial trailing blocks) ---
    d_big = jax.random.uniform(
        jax.random.PRNGKey(1), (2, 97, 37), dtype=jnp.float32, minval=0.0, maxval=5.0)
    out_big = jax.block_until_ready(
        gaussian_basis(d_big, offsets, widths, tile_m=1024))
    ref_big = jnp.exp((-0.5 / widths ** 2) * (d_big[..., None] - offsets) ** 2)
    assert jnp.allclose(out_big, ref_big, atol=1e-6, rtol=1e-6)

    # --- bf16 output (halves HBM write bytes on the write-bound v5e/v6e) ---
    out_bf16 = jax.block_until_ready(
        gaussian_basis(d_big, offsets, widths, tile_m=1024, out_dtype=jnp.bfloat16))
    assert out_bf16.dtype == jnp.bfloat16
    assert jnp.allclose(out_bf16.astype(jnp.float32), ref_big, atol=2e-2, rtol=2e-2)

    print("KERNEL_OK")
</pallas_src>

<mosaic_0001>
module attributes {stable_mosaic.version = 11 : i64} {
  func.func @_gaussian_kernel_lane_dense(%arg0: i32, %arg1: memref<56x2xf32, #tpu.memory_space<vmem>>, %arg2: memref<1x128xf32, #tpu.memory_space<vmem>>, %arg3: memref<128x50xf32, #tpu.memory_space<vmem>>) attributes {dimension_semantics = [#tpu.dimension_semantics<parallel>], iteration_bounds = array<i64: 1>, scalar_prefetch = 0 : i64, scratch_operands = 0 : i64, tpu.core_type = #tpu.core_type<tc>, window_params = [{pipeline_mode = #tpu.pipeline_mode<synchronous>, transform_indices = @transform_0, window_bounds = array<i64: 56, 2>}, {transform_indices = @transform_1, window_bounds = array<i64: 1, 128>}, {transform_indices = @transform_2, window_bounds = array<i64: 128, 50>}]} {
    %c0 = arith.constant 0 : index
    %c0_0 = arith.constant 0 : index
    %0 = vector.load %arg2[%c0, %c0_0] : memref<1x128xf32, #tpu.memory_space<vmem>>, vector<1x128xf32>
    %c0_1 = arith.constant 0 : index
    %c0_2 = arith.constant 0 : index
    %1 = vector.load %arg1[%c0_1, %c0_2] : memref<56x2xf32, #tpu.memory_space<vmem>>, vector<56x1xf32>
    %c0_3 = arith.constant 0 : index
    %c1 = arith.constant 1 : index
    %2 = vector.load %arg1[%c0_3, %c1] : memref<56x2xf32, #tpu.memory_space<vmem>>, vector<56x1xf32>
    %3 = vector.broadcast %0 : vector<1x128xf32> to vector<56x128xf32>
    %4 = vector.broadcast %1 : vector<56x1xf32> to vector<56x128xf32>
    %5 = arith.subf %3, %4 : vector<56x128xf32>
    %6 = arith.mulf %5, %5 : vector<56x128xf32>
    %7 = vector.broadcast %2 : vector<56x1xf32> to vector<56x128xf32>
    %8 = arith.mulf %7, %6 : vector<56x128xf32>
    %9 = math.exp %8 : vector<56x128xf32>
    %10 = tpu.transpose %9, [1, 0] : vector<56x128xf32> -> vector<128x56xf32>
    %11 = vector.extract_strided_slice %10 {offsets = [0, 0], sizes = [128, 50], strides = [1, 1]} : vector<128x56xf32> to vector<128x50xf32>
    %c0_4 = arith.constant 0 : index
    %c0_5 = arith.constant 0 : index
    %12 = vector.load %arg3[%c0_4, %c0_5] : memref<128x50xf32, #tpu.memory_space<vmem>>, vector<128x50xf32>
    tpu.vector_store %arg3[%c0_4, %c0_5], %11 {strides = array<i32>} : memref<128x50xf32, #tpu.memory_space<vmem>>, vector<128x50xf32>,
    return
  }
  func.func @transform_0(%arg0: i32) -> (i32, i32) {
    %c0_i32 = arith.constant 0 : i32
    %c0_i32_0 = arith.constant 0 : i32
    %c0_i32_1 = arith.constant 0 : i32
    return %c0_i32, %c0_i32_0 : i32, i32
  }
  func.func @transform_1(%arg0: i32) -> (i32, i32) {
    %c0_i32 = arith.constant 0 : i32
    %c0_i32_0 = arith.constant 0 : i32
    return %c0_i32, %arg0 : i32, i32
  }
  func.func @transform_2(%arg0: i32) -> (i32, i32) {
    %c0_i32 = arith.constant 0 : i32
    %c0_i32_0 = arith.constant 0 : i32
    return %arg0, %c0_i32 : i32, i32
  }
}

module attributes {stable_mosaic.version = 11 : i64} {
  func.func @_gaussian_kernel_row_major(%arg0: i32, %arg1: memref<2x50xf32, #tpu.memory_space<vmem>>, %arg2: memref<64x1xf32, #tpu.memory_space<vmem>>, %arg3: memref<64x50xf32, #tpu.memory_space<vmem>>) attributes {dimension_semantics = [#tpu.dimension_semantics<parallel>], iteration_bounds = array<i64: 1>, scalar_prefetch = 0 : i64, scratch_operands = 0 : i64, tpu.core_type = #tpu.core_type<tc>, window_params = [{pipeline_mode = #tpu.pipeline_mode<synchronous>, transform_indices = @transform_0, window_bounds = array<i64: 2, 50>}, {transform_indices = @transform_1, window_bounds = array<i64: 64, 1>}, {transform_indices = @transform_2, window_bounds = array<i64: 64, 50>}]} {
    %c0 = arith.constant 0 : index
    %c0_0 = arith.constant 0 : index
    %0 = vector.load %arg2[%c0, %c0_0] : memref<64x1xf32, #tpu.memory_space<vmem>>, vector<64x1xf32>
    %c0_1 = arith.constant 0 : index
    %c0_2 = arith.constant 0 : index
    %1 = vector.load %arg1[%c0_1, %c0_2] : memref<2x50xf32, #tpu.memory_space<vmem>>, vector<1x50xf32>
    %c1 = arith.constant 1 : index
    %c0_3 = arith.constant 0 : index
    %2 = vector.load %arg1[%c1, %c0_3] : memref<2x50xf32, #tpu.memory_space<vmem>>, vector<1x50xf32>
    %3 = vector.broadcast %0 : vector<64x1xf32> to vector<64x50xf32>
    %4 = vector.broadcast %1 : vector<1x50xf32> to vector<64x50xf32>
    %5 = arith.subf %3, %4 : vector<64x50xf32>
    %6 = arith.mulf %5, %5 : vector<64x50xf32>
    %7 = vector.broadcast %2 : vector<1x50xf32> to vector<64x50xf32>
    %8 = arith.mulf %7, %6 : vector<64x50xf32>
    %9 = math.exp %8 : vector<64x50xf32>
    %c0_4 = arith.constant 0 : index
    %c0_5 = arith.constant 0 : index
    %10 = vector.load %arg3[%c0_4, %c0_5] : memref<64x50xf32, #tpu.memory_space<vmem>>, vector<64x50xf32>
    tpu.vector_store %arg3[%c0_4, %c0_5], %9 {strides = array<i32>} : memref<64x50xf32, #tpu.memory_space<vmem>>, vector<64x50xf32>,
    return
  }
  func.func @transform_0(%arg0: i32) -> (i32, i32) {
    %c0_i32 = arith.constant 0 : i32
    %c0_i32_0 = arith.constant 0 : i32
    %c0_i32_1 = arith.constant 0 : i32
    return %c0_i32, %c0_i32_0 : i32, i32
  }
  func.func @transform_1(%arg0: i32) -> (i32, i32) {
    %c0_i32 = arith.constant 0 : i32
    %c0_i32_0 = arith.constant 0 : i32
    return %arg0, %c0_i32 : i32, i32
  }
  func.func @transform_2(%arg0: i32) -> (i32, i32) {
    %c0_i32 = arith.constant 0 : i32
    %c0_i32_0 = arith.constant 0 : i32
    return %arg0, %c0_i32 : i32, i32
  }
}

</mosaic_0001>

<llo_original>
// kernel: tpu_custom_call.1
$region0: #{tpu_custom_call.1}
  #allocation0 [shape = 'u32[]', space=smem, size = 0x4, offset = 0x4, fixed_abs, tag = 'smem constant byte address 0x4 - core index']
  #allocation1 [shape = 'u32[72,128]{1,0:T(1,128)}', space=vmem, size = 0x9000, scoped, tag = 'internal scratch']
  %s0 = inlined_call_operand.vmem [shape: f32[56,2], index: 0, kind: input, shape index: {}]
  %s1 = inlined_call_operand.vmem [shape: f32[1,64], index: 1, kind: input, shape index: {}]
  %s2 = inlined_call_operand.vmem [shape: f32[64,50], index: 2, kind: output, shape index: {}]
  %s3 = sld [smem:[#allocation0]]
  $region52: #{tpu_custom_call.1} parent=0
    _
  %s5 = ssub.s32 1, %s3
  %s6 = scalar_select 0, %s5, %s3
  $region1: #{tpu_custom_call.1} parent=0
    #allocation2 [shape = 'u8[65536]{0}', space=vmem, size = 0x10000, scoped, tag = 'output window, operand 0, single buffered']
    // Predicated region
    $region2: #{tpu_custom_call.1} parent=1 // pred_check
      _
    $region3: #{tpu_custom_call.1} parent=1 // pred_check_branch
      %8 = sbr.rel (0) target = $region5
    $region4: #{tpu_custom_call.1} parent=1 // pred_region
      _
    $region5: #{tpu_custom_call.1} parent=1 // pred_fallthru
      _
    // Predicated region
    $region6: #{tpu_custom_call.1} parent=1 // pred_check
      _
    $region7: #{tpu_custom_call.1} parent=1 // pred_check_branch
      %10 = sbr.rel (0) target = $region9
    $region8: #{tpu_custom_call.1} parent=1 // pred_region
      _
    $region9: #{tpu_custom_call.1} parent=1 // pred_fallthru
      _
    %v11 = vld [vmem:[%s1] sm:$0x1]
    %v12 = vld [vmem:[%s0] sm:$0xff]
    %v13 = vld [vmem:[%s0 + $0x8] sm:$0xff]
    %v14 = vld [vmem:[%s0 + $0x10] sm:$0xff]
    %v15 = vld [vmem:[%s0 + $0x18] sm:$0xff]
    %v16 = vld [vmem:[%s0 + $0x20] sm:$0xff]
    %v17 = vld [vmem:[%s0 + $0x28] sm:$0xff]
    %v18 = vld [vmem:[%s0 + $0x30] sm:$0xff]
    %v20 = vperm.slane %v11, 0
    %23 = vset.pattern.permute.xlu0 0
    %24 = vperm.xlu0 %23, %v12
    %v25 = vpop.permute.xlu0 %24
    %28 = vset.pattern.permute.xlu0 0
    %29 = vperm.xlu0 %28, %v13
    %v30 = vpop.permute.xlu0 %29
    %33 = vset.pattern.permute.xlu0 0
    %34 = vperm.xlu0 %33, %v14
    %v35 = vpop.permute.xlu0 %34
    %38 = vset.pattern.permute.xlu0 0
    %39 = vperm.xlu0 %38, %v15
    %v40 = vpop.permute.xlu0 %39
    %43 = vset.pattern.permute.xlu0 0
    %44 = vperm.xlu0 %43, %v16
    %v45 = vpop.permute.xlu0 %44
    %48 = vset.pattern.permute.xlu0 0
    %49 = vperm.xlu0 %48, %v17
    %v50 = vpop.permute.xlu0 %49
    %53 = vset.pattern.permute.xlu0 0
    %54 = vperm.xlu0 %53, %v18
    %v55 = vpop.permute.xlu0 %54
    %v57 = vsub.f32 %v20, %v25
    %v58 = vsub.f32 %v20, %v30
    %v59 = vsub.f32 %v20, %v35
    %v60 = vsub.f32 %v20, %v40
    %v61 = vsub.f32 %v20, %v45
    %v62 = vsub.f32 %v20, %v50
    %v63 = vsub.f32 %v20, %v55
    %v64 = vmul.f32 %v57, %v57
    %v65 = vmul.f32 %v58, %v58
    %v66 = vmul.f32 %v59, %v59
    %v67 = vmul.f32 %v60, %v60
    %v68 = vmul.f32 %v61, %v61
    %v69 = vmul.f32 %v62, %v62
    %v70 = vmul.f32 %v63, %v63
    %71 = vset.pattern.permute.xlu0 1
    %72 = vperm.xlu0 %71, %v12
    %v73 = vpop.permute.xlu0 %72
    %75 = vset.pattern.permute.xlu0 1
    %76 = vperm.xlu0 %75, %v13
    %v77 = vpop.permute.xlu0 %76
    %79 = vset.pattern.permute.xlu0 1
    %80 = vperm.xlu0 %79, %v14
    %v81 = vpop.permute.xlu0 %80
    %83 = vset.pattern.permute.xlu0 1
    %84 = vperm.xlu0 %83, %v15
    %v85 = vpop.permute.xlu0 %84
    %87 = vset.pattern.permute.xlu0 1
    %88 = vperm.xlu0 %87, %v16
    %v89 = vpop.permute.xlu0 %88
    %91 = vset.pattern.permute.xlu0 1
    %92 = vperm.xlu0 %91, %v17
    %v93 = vpop.permute.xlu0 %92
    %95 = vset.pattern.permute.xlu0 1
    %96 = vperm.xlu0 %95, %v18
    %v97 = vpop.permute.xlu0 %96
    %v99 = vmul.f32 %v73, %v64
    %v100 = vmul.f32 %v77, %v65
    %v101 = vmul.f32 %v81, %v66
    %v102 = vmul.f32 %v85, %v67
    %v103 = vmul.f32 %v89, %v68
    %v104 = vmul.f32 %v93, %v69
    %v105 = vmul.f32 %v97, %v70
    %v106 = vmul.f32 %v99, 1.442695
    %v107 = vpow.pop %v106
    %v108 = vmul.f32 %v100, 1.442695
    %v109 = vpow.pop %v108
    %v110 = vmul.f32 %v101, 1.442695
    %v111 = vpow.pop %v110
    %v112 = vmul.f32 %v102, 1.442695
    %v113 = vpow.pop %v112
    %v114 = vmul.f32 %v103, 1.442695
    %v115 = vpow.pop %v114
    %v116 = vmul.f32 %v104, 1.442695
    %v117 = vpow.pop %v116
    %v118 = vmul.f32 %v105, 1.442695
    %v119 = vpow.pop %v118
    %120 = vxpose.xlu0.b32.start [1/16] %v107, 128
    %121 = vxpose.xlu0.b32.cont [2/16] %v109, 128
    %122 = vxpose.xlu0.b32.cont [3/16] %v111, 128
    %123 = vxpose.xlu0.b32.cont [4/16] %v113, 128
    %124 = vxpose.xlu0.b32.cont [5/16] %v115, 128
    %125 = vxpose.xlu0.b32.cont [6/16] %v117, 128
    %126 = vxpose.xlu0.b32.cont [7/16] %v119, 128
    %127 = vxpose.xlu0.b32.cont [8/16] 0.0, 128
    %128 = vxpose.xlu0.b32.cont [9/16] 0.0, 128
    %129 = vxpose.xlu0.b32.cont [10/16] 0.0, 128
    %130 = vxpose.xlu0.b32.cont [11/16] 0.0, 128
    %131 = vxpose.xlu0.b32.cont [12/16] 0.0, 128
    %132 = vxpose.xlu0.b32.cont [13/16] 0.0, 128
    %133 = vxpose.xlu0.b32.cont [14/16] 0.0, 128
    %134 = vxpose.xlu0.b32.cont [15/16] 0.0, 128
    %135 = vxpose.xlu0.b32.end [16/16] 0.0, 128
    %v136 = vpop.trf.xlu0
    %v137 = vpop.trf.xlu0
    %v138 = vpop.trf.xlu0
    %v139 = vpop.trf.xlu0
    %v140 = vpop.trf.xlu0
    %v141 = vpop.trf.xlu0
    %v142 = vpop.trf.xlu0
    %v143 = vpop.trf.xlu0
    %v144 = vpop.trf.xlu0
    %v145 = vpop.trf.xlu0
    %v146 = vpop.trf.xlu0
    %v147 = vpop.trf.xlu0
    %v148 = vpop.trf.xlu0
    %v149 = vpop.trf.xlu0
    %v150 = vpop.trf.xlu0
    %v151 = vpop.trf.xlu0
    %vm152 = vcmask 408576
    %153 = vst.msk [vmem:[#allocation2] sm:$0xff] %vm152, %v136
    %154 = vst.msk [vmem:[#allocation2 + $0x8] sm:$0xff] %vm152, %v137
    %155 = vst.msk [vmem:[#allocation2 + $0x10] sm:$0xff] %vm152, %v138
    %156 = vst.msk [vmem:[#allocation2 + $0x18] sm:$0xff] %vm152, %v139
    %157 = vst.msk [vmem:[#allocation2 + $0x20] sm:$0xff] %vm152, %v140
    %158 = vst.msk [vmem:[#allocation2 + $0x28] sm:$0xff] %vm152, %v141
    %159 = vst.msk [vmem:[#allocation2 + $0x30] sm:$0xff] %vm152, %v142
    %160 = vst.msk [vmem:[#allocation2 + $0x38] sm:$0xff] %vm152, %v143
    %161 = vst.msk [vmem:[#allocation2 + $0x40] sm:$0xff] %vm152, %v144
    %162 = vst.msk [vmem:[#allocation2 + $0x48] sm:$0xff] %vm152, %v145
    %163 = vst.msk [vmem:[#allocation2 + $0x50] sm:$0xff] %vm152, %v146
    %164 = vst.msk [vmem:[#allocation2 + $0x58] sm:$0xff] %vm152, %v147
    %165 = vst.msk [vmem:[#allocation2 + $0x60] sm:$0xff] %vm152, %v148
    %166 = vst.msk [vmem:[#allocation2 + $0x68] sm:$0xff] %vm152, %v149
    %167 = vst.msk [vmem:[#allocation2 + $0x70] sm:$0xff] %vm152, %v150
    %168 = vst.msk [vmem:[#allocation2 + $0x78] sm:$0xff] %vm152, %v151
    // Predicated region
    $region10: #{tpu_custom_call.1} parent=1 // pred_check
      _
    $region11: #{tpu_custom_call.1} parent=1 // pred_check_branch
      %170 = sbr.rel (0) target = $region13
    $region12: #{tpu_custom_call.1} parent=1 // pred_region
      // Predicated region
      $region14: #{tpu_custom_call.1} parent=12 // pred_check
        _
      $region15: #{tpu_custom_call.1} parent=12 // pred_check_branch
        %172 = sbr.rel (0) target = $region17
      $region16: #{tpu_custom_call.1} parent=12 // pred_region
        // Predicated region
        $region18: #{tpu_custom_call.1} parent=16 // pred_check
          _
        $region19: #{tpu_custom_call.1} parent=16 // pred_check_branch
          %174 = sbr.rel (0) target = $region21
        $region20: #{tpu_custom_call.1} parent=16 // pred_region
          // Predicated region
          $region33: #{tpu_custom_call.1} parent=20 // pred_check
            _
          $region34: #{tpu_custom_call.1} parent=20 // pred_check_branch
            %204 = sbr.rel (0) target = $region36
          $region35: #{tpu_custom_call.1} parent=20 // pred_region
            loop: start=0, step=1, limit=1
            $region37: #{tpu_custom_call.1} parent=35 // loop_pre_header
              _
            $region38: #{tpu_custom_call.1} parent=35 // loop_header
              %s206 = sphi 0, %s210
              %p207 = scmp.ge.s32.totalorder %s206, 1
              %s211 = sphi [#allocation2], [#allocation2]
              %s212 = sphi %s2, %s2
            $region39: #{tpu_custom_call.1} parent=35 // loop_header_branch
              %209 = sbr.rel (%p207) target = $region43
            $region40: #{tpu_custom_call.1} parent=35 // loop_body
              %v213 = vld [vmem:[%s211] sm:$0xff]
              %214 = vst [vmem:[%s212] sm:$0xff] %v213
              %v215 = vld [vmem:[%s211 + $0x8] sm:$0xff]
              %216 = vst [vmem:[%s212 + $0x8] sm:$0xff] %v215
              %v217 = vld [vmem:[%s211 + $0x10] sm:$0xff]
              %218 = vst [vmem:[%s212 + $0x10] sm:$0xff] %v217
              %v219 = vld [vmem:[%s211 + $0x18] sm:$0xff]
              %220 = vst [vmem:[%s212 + $0x18] sm:$0xff] %v219
              %v221 = vld [vmem:[%s211 + $0x20] sm:$0xff]
              %222 = vst [vmem:[%s212 + $0x20] sm:$0xff] %v221
              %v223 = vld [vmem:[%s211 + $0x28] sm:$0xff]
              %224 = vst [vmem:[%s212 + $0x28] sm:$0xff] %v223
              %v225 = vld [vmem:[%s211 + $0x30] sm:$0xff]
              %226 = vst [vmem:[%s212 + $0x30] sm:$0xff] %v225
              %v227 = vld [vmem:[%s211 + $0x38] sm:$0xff]
              %228 = vst [vmem:[%s212 + $0x38] sm:$0xff] %v227
            $region41: #{tpu_custom_call.1} parent=35 // loop_footer
              %s210 = sadd.s32 1, %s206
            $region42: #{tpu_custom_call.1} parent=35 // loop_footer_branch
              %205 = sbr.rel target = $region38
            $region43: #{tpu_custom_call.1} parent=35 // loop_exit
              _
          $region36: #{tpu_custom_call.1} parent=20 // pred_fallthru
            _
          // Predicated region
          $region44: #{tpu_custom_call.1} parent=20 // pred_check
            _
          $region45: #{tpu_custom_call.1} parent=20 // pred_check_branch
            %230 = sbr.rel target = $region47
          $region46: #{tpu_custom_call.1} parent=20 // pred_region
            _
          $region47: #{tpu_custom_call.1} parent=20 // pred_fallthru
            _
        $region21: #{tpu_custom_call.1} parent=16 // pred_fallthru
          _
        // Predicated region
        $region22: #{tpu_custom_call.1} parent=16 // pred_check
          _
        $region23: #{tpu_custom_call.1} parent=16 // pred_check_branch
          %176 = sbr.rel target = $region25
        $region24: #{tpu_custom_call.1} parent=16 // pred_region
          %s178 = ssub.s32 256, 1
          loop: start=0, step=1, limit=1
          $region26: #{tpu_custom_call.1} parent=24 // loop_pre_header
            _
          $region27: #{tpu_custom_call.1} parent=24 // loop_header
            %s180 = sphi 0, %s184
            %p181 = scmp.ge.s32.totalorder %s180, 1
            %s185 = sphi [#allocation2], [#allocation2]
            %s186 = sphi %s2, %s2
          $region28: #{tpu_custom_call.1} parent=24 // loop_header_branch
            %183 = sbr.rel (%p181) target = $region32
          $region29: #{tpu_custom_call.1} parent=24 // loop_body
            %v187 = vld [vmem:[%s185] sm:%s178]
            %188 = vst [vmem:[%s186] sm:%s178] %v187
            %v189 = vld [vmem:[%s185 + $0x8] sm:%s178]
            %190 = vst [vmem:[%s186 + $0x8] sm:%s178] %v189
            %v191 = vld [vmem:[%s185 + $0x10] sm:%s178]
            %192 = vst [vmem:[%s186 + $0x10] sm:%s178] %v191
            %v193 = vld [vmem:[%s185 + $0x18] sm:%s178]
            %194 = vst [vmem:[%s186 + $0x18] sm:%s178] %v193
            %v195 = vld [vmem:[%s185 + $0x20] sm:%s178]
            %196 = vst [vmem:[%s186 + $0x20] sm:%s178] %v195
            %v197 = vld [vmem:[%s185 + $0x28] sm:%s178]
            %198 = vst [vmem:[%s186 + $0x28] sm:%s178] %v197
            %v199 = vld [vmem:[%s185 + $0x30] sm:%s178]
            %200 = vst [vmem:[%s186 + $0x30] sm:%s178] %v199
            %v201 = vld [vmem:[%s185 + $0x38] sm:%s178]
            %202 = vst [vmem:[%s186 + $0x38] sm:%s178] %v201
          $region30: #{tpu_custom_call.1} parent=24 // loop_footer
            %s184 = sadd.s32 1, %s180
          $region31: #{tpu_custom_call.1} parent=24 // loop_footer_branch
            %179 = sbr.rel target = $region27
          $region32: #{tpu_custom_call.1} parent=24 // loop_exit
            _
        $region25: #{tpu_custom_call.1} parent=16 // pred_fallthru
          _
      $region17: #{tpu_custom_call.1} parent=12 // pred_fallthru
        _
      %231 = vnop
    $region13: #{tpu_custom_call.1} parent=1 // pred_fallthru
      _
    // Predicated region
    $region48: #{tpu_custom_call.1} parent=1 // pred_check
      _
    $region49: #{tpu_custom_call.1} parent=1 // pred_check_branch
      %233 = sbr.rel (0) target = $region51
    $region50: #{tpu_custom_call.1} parent=1 // pred_region
      _
    $region51: #{tpu_custom_call.1} parent=1 // pred_fallthru
      _

// kernel: tpu_custom_call.1
$region0: #{tpu_custom_call.1}
  #allocation0 [shape = 'u32[]', space=smem, size = 0x4, offset = 0x4, fixed_abs, tag = 'smem constant byte address 0x4 - core index']
  #allocation1 [shape = 'u32[72,128]{1,0:T(1,128)}', space=vmem, size = 0x9000, scoped, tag = 'internal scratch']
  %s0 = inlined_call_operand.vmem [shape: f32[2,50], index: 0, kind: input, shape index: {}]
  %s1 = inlined_call_operand.vmem [shape: f32[64,1], index: 1, kind: input, shape index: {}]
  %s2 = inlined_call_operand.vmem [shape: f32[64,50], index: 2, kind: output, shape index: {}]
  %s3 = sld [smem:[#allocation0]]
  $region18: #{tpu_custom_call.1} parent=0
    _
  %s5 = ssub.s32 1, %s3
  %s6 = scalar_select 0, %s5, %s3
  // Predicated region
  $region2: #{tpu_custom_call.1} parent=0 // pred_check
    _
  $region3: #{tpu_custom_call.1} parent=0 // pred_check_branch
    %8 = sbr.rel (0) target = $region5
  $region4: #{tpu_custom_call.1} parent=0 // pred_region
    _
  $region5: #{tpu_custom_call.1} parent=0 // pred_fallthru
    _
  // Predicated region
  $region6: #{tpu_custom_call.1} parent=0 // pred_check
    _
  $region7: #{tpu_custom_call.1} parent=0 // pred_check_branch
    %10 = sbr.rel (0) target = $region9
  $region8: #{tpu_custom_call.1} parent=0 // pred_region
    _
  $region9: #{tpu_custom_call.1} parent=0 // pred_fallthru
    _
  %v11 = vld [vmem:[%s1] sm:$0xff]
  %v12 = vld [vmem:[%s1 + $0x8] sm:$0xff]
  %v13 = vld [vmem:[%s1 + $0x10] sm:$0xff]
  %v14 = vld [vmem:[%s1 + $0x18] sm:$0xff]
  %v15 = vld [vmem:[%s1 + $0x20] sm:$0xff]
  %v16 = vld [vmem:[%s1 + $0x28] sm:$0xff]
  %v17 = vld [vmem:[%s1 + $0x30] sm:$0xff]
  %v18 = vld [vmem:[%s1 + $0x38] sm:$0xff]
  %v19 = vld [vmem:[%s0] sm:$0x1]
  %v20 = vld [vmem:[%s0 + $0x1] sm:$0x1]
  %22 = vset.pattern.permute.xlu0 0
  %23 = vperm.xlu0 %22, %v11
  %v24 = vpop.permute.xlu0 %23
  %27 = vset.pattern.permute.xlu0 0
  %28 = vperm.xlu0 %27, %v12
  %v29 = vpop.permute.xlu0 %28
  %32 = vset.pattern.permute.xlu0 0
  %33 = vperm.xlu0 %32, %v13
  %v34 = vpop.permute.xlu0 %33
  %37 = vset.pattern.permute.xlu0 0
  %38 = vperm.xlu0 %37, %v14
  %v39 = vpop.permute.xlu0 %38
  %42 = vset.pattern.permute.xlu0 0
  %43 = vperm.xlu0 %42, %v15
  %v44 = vpop.permute.xlu0 %43
  %47 = vset.pattern.permute.xlu0 0
  %48 = vperm.xlu0 %47, %v16
  %v49 = vpop.permute.xlu0 %48
  %52 = vset.pattern.permute.xlu0 0
  %53 = vperm.xlu0 %52, %v17
  %v54 = vpop.permute.xlu0 %53
  %57 = vset.pattern.permute.xlu0 0
  %58 = vperm.xlu0 %57, %v18
  %v59 = vpop.permute.xlu0 %58
  %v61 = vperm.slane %v19, 0
  %v62 = vsub.f32 %v24, %v61
  %v63 = vsub.f32 %v29, %v61
  %v64 = vsub.f32 %v34, %v61
  %v65 = vsub.f32 %v39, %v61
  %v66 = vsub.f32 %v44, %v61
  %v67 = vsub.f32 %v49, %v61
  %v68 = vsub.f32 %v54, %v61
  %v69 = vsub.f32 %v59, %v61
  %v70 = vmul.f32 %v62, %v62
  %v71 = vmul.f32 %v63, %v63
  %v72 = vmul.f32 %v64, %v64
  %v73 = vmul.f32 %v65, %v65
  %v74 = vmul.f32 %v66, %v66
  %v75 = vmul.f32 %v67, %v67
  %v76 = vmul.f32 %v68, %v68
  %v77 = vmul.f32 %v69, %v69
  %v78 = vperm.slane %v20, 0
  %v79 = vmul.f32 %v78, %v70
  %v80 = vmul.f32 %v78, %v71
  %v81 = vmul.f32 %v78, %v72
  %v82 = vmul.f32 %v78, %v73
  %v83 = vmul.f32 %v78, %v74
  %v84 = vmul.f32 %v78, %v75
  %v85 = vmul.f32 %v78, %v76
  %v86 = vmul.f32 %v78, %v77
  %v87 = vmul.f32 %v79, 1.442695
  %v88 = vpow.pop %v87
  %v89 = vmul.f32 %v80, 1.442695
  %v90 = vpow.pop %v89
  %v91 = vmul.f32 %v81, 1.442695
  %v92 = vpow.pop %v91
  %v93 = vmul.f32 %v82, 1.442695
  %v94 = vpow.pop %v93
  %v95 = vmul.f32 %v83, 1.442695
  %v96 = vpow.pop %v95
  %v97 = vmul.f32 %v84, 1.442695
  %v98 = vpow.pop %v97
  %v99 = vmul.f32 %v85, 1.442695
  %v100 = vpow.pop %v99
  %v101 = vmul.f32 %v86, 1.442695
  %v102 = vpow.pop %v101
  %vm103 = vcmask 408576
  %104 = vst.msk [vmem:[%s2] sm:$0xff] %vm103, %v88
  %105 = vst.msk [vmem:[%s2 + $0x8] sm:$0xff] %vm103, %v90
  %106 = vst.msk [vmem:[%s2 + $0x10] sm:$0xff] %vm103, %v92
  %107 = vst.msk [vmem:[%s2 + $0x18] sm:$0xff] %vm103, %v94
  %108 = vst.msk [vmem:[%s2 + $0x20] sm:$0xff] %vm103, %v96
  %109 = vst.msk [vmem:[%s2 + $0x28] sm:$0xff] %vm103, %v98
  %110 = vst.msk [vmem:[%s2 + $0x30] sm:$0xff] %vm103, %v100
  %111 = vst.msk [vmem:[%s2 + $0x38] sm:$0xff] %vm103, %v102
  // Predicated region
  $region10: #{tpu_custom_call.1} parent=0 // pred_check
    _
  $region11: #{tpu_custom_call.1} parent=0 // pred_check_branch
    %113 = sbr.rel (0) target = $region13
  $region12: #{tpu_custom_call.1} parent=0 // pred_region
    _
  $region13: #{tpu_custom_call.1} parent=0 // pred_fallthru
    _
  // Predicated region
  $region14: #{tpu_custom_call.1} parent=0 // pred_check
    _
  $region15: #{tpu_custom_call.1} parent=0 // pred_check_branch
    %115 = sbr.rel (0) target = $region17
  $region16: #{tpu_custom_call.1} parent=0 // pred_region
    _
  $region17: #{tpu_custom_call.1} parent=0 // pred_fallthru
    _

</llo_original>
